<compile_context>
chip_gen: v7x
topology: tpu7x:2x2x1
jax: 0.10.0
libtpu: 0.0.40
codegen_flags: <defaults>
</compile_context>

<pallas_src>
import math

import jax
import jax.numpy as jnp
from jax.experimental import pallas as pl
from jax.experimental.pallas import tpu as pltpu


_HIDDEN1 = 128
_HIDDEN2 = 256


def _round_up(n, m):
    return (n + m - 1) // m * m


def _poly_mlp_kernel(x_ref, w1a_ref, w1b_ref, w1c_ref, b1_ref,
                     w2_ref, b2_ref, w3_ref, b3_ref, o_ref):
    # Polynomial features built in-register (VPU), f32 throughout.
    x = x_ref[...]                                  # (tm, 3L) f32
    x2 = x * x
    x3 = x2 * x

    # Layer 1: [x | x^2 | x^3] @ W1 + b1, ReLU.  W1 is pre-split along K so no
    # lane-axis concat is needed; row ordering matches torch.cat(dim=1) then
    # flatten(1, 2) for a (B, 3, L) input.
    h1 = jnp.dot(x, w1a_ref[...], preferred_element_type=jnp.float32)
    h1 += jnp.dot(x2, w1b_ref[...], preferred_element_type=jnp.float32)
    h1 += jnp.dot(x3, w1c_ref[...], preferred_element_type=jnp.float32)
    h1 = jnp.maximum(h1 + b1_ref[...], 0.0)

    # Layer 2: (tm, 128) @ (128, 256) + b2, ReLU
    h2 = jnp.dot(h1, w2_ref[...], preferred_element_type=jnp.float32)
    h2 = jnp.maximum(h2 + b2_ref[...], 0.0)

    # Layer 3: (tm, 256) @ (256, 3*window) + b3 — narrow output stored directly
    # (masked lane store, but only 3*window lanes: far cheaper than padding).
    out = jnp.dot(h2, w3_ref[...], preferred_element_type=jnp.float32)
    o_ref[...] = (out + b3_ref[...]).astype(o_ref.dtype)


def polynomial_model_forward(x, params, window, *, block_batch=2048):
    """x: (B, 3, L) float32.  Returns (B, window, 3) float32."""
    w1, b1, w2, b2, w3, b3 = params
    B, C, L = x.shape
    assert C == 3, "Polynomial_model requires 3 input channels"
    din = 9 * L
    dout = 3 * window
    assert w1.shape == (din, _HIDDEN1) and w3.shape == (_HIDDEN2, dout)

    # --- weight prep (tiny slices; folded under jit): W1 split along K into
    # --- the x / x^2 / x^3 slabs so the kernel never concatenates on lanes.
    c = 3 * L
    w1a = w1[0 * c:1 * c]
    w1b = w1[1 * c:2 * c]
    w1c = w1[2 * c:3 * c]
    b1r = b1.reshape(1, _HIDDEN1)
    b2r = b2.reshape(1, _HIDDEN2)
    b3r = b3.reshape(1, dout)

    # --- batch tiling: no padding; >= 2 grid steps when B > 8 so v7x's two
    # --- TensorCores both get work; big tiles to amortize per-step overhead.
    target_steps = max(2, pl.cdiv(B, block_batch))
    tm = max(8, _round_up(pl.cdiv(B, target_steps), 8))
    grid = (pl.cdiv(B, tm),)

    x2d = x.reshape(B, c)                           # channel-major flatten (view)

    bytes_w = 4 * (w1.size + w2.size + w3.size + b1.size + b2.size + b3.size)
    cost = pl.CostEstimate(
        flops=2 * B * (din * _HIDDEN1 + _HIDDEN1 * _HIDDEN2 + _HIDDEN2 * dout),
        transcendentals=0,
        bytes_accessed=x2d.size * 4 + B * dout * 4 + bytes_w,
    )

    const = lambda i: (0, 0)
    out2d = pl.pallas_call(
        _poly_mlp_kernel,
        out_shape=jax.ShapeDtypeStruct((B, dout), jnp.float32),
        grid=grid,
        in_specs=[
            pl.BlockSpec((tm, c), lambda i: (i, 0)),        # x tile
            pl.BlockSpec((c, _HIDDEN1), const),             # W1a (x slab)
            pl.BlockSpec((c, _HIDDEN1), const),             # W1b (x^2 slab)
            pl.BlockSpec((c, _HIDDEN1), const),             # W1c (x^3 slab)
            pl.BlockSpec((1, _HIDDEN1), const),             # b1
            pl.BlockSpec((_HIDDEN1, _HIDDEN2), const),      # W2
            pl.BlockSpec((1, _HIDDEN2), const),             # b2
            pl.BlockSpec((_HIDDEN2, dout), const),          # W3 (unpadded)
            pl.BlockSpec((1, dout), const),                 # b3 (unpadded)
        ],
        out_specs=pl.BlockSpec((tm, dout), lambda i: (i, 0)),
        compiler_params=pltpu.CompilerParams(
            dimension_semantics=("parallel",)),
        cost_estimate=cost,
    )(x2d, w1a, w1b, w1c, b1r, w2, b2r, w3, b3r)

    # output.view(-1, window, 3): free view, no slicing/padding left to undo.
    return out2d.reshape(-1, window, 3)


def init_params(key, length, window):
    """Deterministic init mirroring nn.Linear shapes (stored transposed:
    (in, out) so the kernel does x @ W)."""
    din = 9 * length
    dims = [(din, _HIDDEN1), (_HIDDEN1, _HIDDEN2), (_HIDDEN2, 3 * window)]
    params = []
    for fan_in, fan_out in dims:
        kw, kb, key = jax.random.split(key, 3)
        bound = 1.0 / math.sqrt(fan_in)
        w = jax.random.uniform(kw, (fan_in, fan_out), jnp.float32, -bound, bound)
        b = jax.random.uniform(kb, (1, fan_out), jnp.float32, -bound, bound)
        params += [w, b]
    return tuple(params)


def reference_forward(x, params, window):
    """Pure-JAX f32 reference (HIGHEST matmul precision)."""
    w1, b1, w2, b2, w3, b3 = params
    B = x.shape[0]
    poly = jnp.concatenate([x, x ** 2, x ** 3], axis=1).reshape(B, -1)
    hi = jax.lax.Precision.HIGHEST
    h1 = jnp.maximum(jnp.dot(poly, w1, precision=hi) + b1, 0.0)
    h2 = jnp.maximum(jnp.dot(h1, w2, precision=hi) + b2, 0.0)
    out = jnp.dot(h2, w3, precision=hi) + b3
    return out.reshape(-1, window, 3)


if __name__ == "__main__":
    LENGTH = 8     # args.length
    WINDOW = 8     # args.window
    B = 13         # ragged batch: exercises the partial last grid block

    key = jax.random.PRNGKey(0)
    kx, kp = jax.random.split(key)
    x = jax.random.normal(kx, (B, 3, LENGTH), jnp.float32)
    params = init_params(kp, LENGTH, WINDOW)

    fwd = jax.jit(lambda xx, pp: polynomial_model_forward(xx, pp, WINDOW))
    out = jax.block_until_ready(fwd(x, params))

    ref = reference_forward(x, params, WINDOW)
    assert out.shape == (B, WINDOW, 3), out.shape
    # f32 MXU operands in-kernel; tolerance leaves margin for any reduced-
    # precision f32 matmul lowering while still catching real bugs.
    assert jnp.allclose(out, ref, atol=2e-2, rtol=2e-2), \
        float(jnp.max(jnp.abs(out - ref)))

    print("KERNEL_OK")
</pallas_src>

<mosaic_0001>
module attributes {stable_mosaic.version = 11 : i64} {
  func.func @_poly_mlp_kernel(%arg0: i32, %arg1: memref<8x24xf32, #tpu.memory_space<vmem>>, %arg2: memref<24x128xf32, #tpu.memory_space<vmem>>, %arg3: memref<24x128xf32, #tpu.memory_space<vmem>>, %arg4: memref<24x128xf32, #tpu.memory_space<vmem>>, %arg5: memref<1x128xf32, #tpu.memory_space<vmem>>, %arg6: memref<128x256xf32, #tpu.memory_space<vmem>>, %arg7: memref<1x256xf32, #tpu.memory_space<vmem>>, %arg8: memref<256x24xf32, #tpu.memory_space<vmem>>, %arg9: memref<1x24xf32, #tpu.memory_space<vmem>>, %arg10: memref<8x24xf32, #tpu.memory_space<vmem>>) attributes {dimension_semantics = [#tpu.dimension_semantics<parallel>], iteration_bounds = array<i64: 2>, scalar_prefetch = 0 : i64, scratch_operands = 0 : i64, tpu.core_type = #tpu.core_type<tc>, window_params = [{transform_indices = @transform_0, window_bounds = array<i64: 8, 24>}, {pipeline_mode = #tpu.pipeline_mode<synchronous>, transform_indices = @transform_1, window_bounds = array<i64: 24, 128>}, {pipeline_mode = #tpu.pipeline_mode<synchronous>, transform_indices = @transform_2, window_bounds = array<i64: 24, 128>}, {pipeline_mode = #tpu.pipeline_mode<synchronous>, transform_indices = @transform_3, window_bounds = array<i64: 24, 128>}, {pipeline_mode = #tpu.pipeline_mode<synchronous>, transform_indices = @transform_4, window_bounds = array<i64: 1, 128>}, {pipeline_mode = #tpu.pipeline_mode<synchronous>, transform_indices = @transform_5, window_bounds = array<i64: 128, 256>}, {pipeline_mode = #tpu.pipeline_mode<synchronous>, transform_indices = @transform_6, window_bounds = array<i64: 1, 256>}, {pipeline_mode = #tpu.pipeline_mode<synchronous>, transform_indices = @transform_7, window_bounds = array<i64: 256, 24>}, {pipeline_mode = #tpu.pipeline_mode<synchronous>, transform_indices = @transform_8, window_bounds = array<i64: 1, 24>}, {transform_indices = @transform_9, window_bounds = array<i64: 8, 24>}]} {
    %c0 = arith.constant 0 : index
    %c0_0 = arith.constant 0 : index
    %0 = vector.load %arg1[%c0, %c0_0] : memref<8x24xf32, #tpu.memory_space<vmem>>, vector<8x24xf32>
    %1 = arith.mulf %0, %0 : vector<8x24xf32>
    %2 = arith.mulf %1, %0 : vector<8x24xf32>
    %c0_1 = arith.constant 0 : index
    %c0_2 = arith.constant 0 : index
    %3 = vector.load %arg2[%c0_1, %c0_2] : memref<24x128xf32, #tpu.memory_space<vmem>>, vector<24x128xf32>
    %cst = arith.constant dense<0.000000e+00> : vector<8x128xf32>
    %4 = tpu.matmul %0, %3, %cst {dimension_numbers = #tpu.dot_dimension_numbers<[1], [0], [0], [1], [0, 0, 1, 1], [], []>} : vector<8x24xf32>, vector<24x128xf32>, vector<8x128xf32> -> vector<8x128xf32>
    %c0_3 = arith.constant 0 : index
    %c0_4 = arith.constant 0 : index
    %5 = vector.load %arg3[%c0_3, %c0_4] : memref<24x128xf32, #tpu.memory_space<vmem>>, vector<24x128xf32>
    %cst_5 = arith.constant dense<0.000000e+00> : vector<8x128xf32>
    %6 = tpu.matmul %1, %5, %cst_5 {dimension_numbers = #tpu.dot_dimension_numbers<[1], [0], [0], [1], [0, 0, 1, 1], [], []>} : vector<8x24xf32>, vector<24x128xf32>, vector<8x128xf32> -> vector<8x128xf32>
    %7 = arith.addf %4, %6 : vector<8x128xf32>
    %c0_6 = arith.constant 0 : index
    %c0_7 = arith.constant 0 : index
    %8 = vector.load %arg4[%c0_6, %c0_7] : memref<24x128xf32, #tpu.memory_space<vmem>>, vector<24x128xf32>
    %cst_8 = arith.constant dense<0.000000e+00> : vector<8x128xf32>
    %9 = tpu.matmul %2, %8, %cst_8 {dimension_numbers = #tpu.dot_dimension_numbers<[1], [0], [0], [1], [0, 0, 1, 1], [], []>} : vector<8x24xf32>, vector<24x128xf32>, vector<8x128xf32> -> vector<8x128xf32>
    %10 = arith.addf %7, %9 : vector<8x128xf32>
    %c0_9 = arith.constant 0 : index
    %c0_10 = arith.constant 0 : index
    %11 = vector.load %arg5[%c0_9, %c0_10] : memref<1x128xf32, #tpu.memory_space<vmem>>, vector<1x128xf32>
    %12 = vector.broadcast %11 : vector<1x128xf32> to vector<8x128xf32>
    %13 = arith.addf %10, %12 : vector<8x128xf32>
    %cst_11 = arith.constant 0.000000e+00 : f32
    %14 = vector.broadcast %cst_11 : f32 to vector<8x128xf32>
    %15 = arith.maximumf %13, %14 : vector<8x128xf32>
    %c0_12 = arith.constant 0 : index
    %c0_13 = arith.constant 0 : index
    %16 = vector.load %arg6[%c0_12, %c0_13] : memref<128x256xf32, #tpu.memory_space<vmem>>, vector<128x256xf32>
    %cst_14 = arith.constant dense<0.000000e+00> : vector<8x256xf32>
    %17 = tpu.matmul %15, %16, %cst_14 {dimension_numbers = #tpu.dot_dimension_numbers<[1], [0], [0], [1], [0, 0, 1, 1], [], []>} : vector<8x128xf32>, vector<128x256xf32>, vector<8x256xf32> -> vector<8x256xf32>
    %c0_15 = arith.constant 0 : index
    %c0_16 = arith.constant 0 : index
    %18 = vector.load %arg7[%c0_15, %c0_16] : memref<1x256xf32, #tpu.memory_space<vmem>>, vector<1x256xf32>
    %19 = vector.broadcast %18 : vector<1x256xf32> to vector<8x256xf32>
    %20 = arith.addf %17, %19 : vector<8x256xf32>
    %cst_17 = arith.constant 0.000000e+00 : f32
    %21 = vector.broadcast %cst_17 : f32 to vector<8x256xf32>
    %22 = arith.maximumf %20, %21 : vector<8x256xf32>
    %c0_18 = arith.constant 0 : index
    %c0_19 = arith.constant 0 : index
    %23 = vector.load %arg8[%c0_18, %c0_19] : memref<256x24xf32, #tpu.memory_space<vmem>>, vector<256x24xf32>
    %cst_20 = arith.constant dense<0.000000e+00> : vector<8x24xf32>
    %24 = tpu.matmul %22, %23, %cst_20 {dimension_numbers = #tpu.dot_dimension_numbers<[1], [0], [0], [1], [0, 0, 1, 1], [], []>} : vector<8x256xf32>, vector<256x24xf32>, vector<8x24xf32> -> vector<8x24xf32>
    %c0_21 = arith.constant 0 : index
    %c0_22 = arith.constant 0 : index
    %25 = vector.load %arg9[%c0_21, %c0_22] : memref<1x24xf32, #tpu.memory_space<vmem>>, vector<1x24xf32>
    %26 = vector.broadcast %25 : vector<1x24xf32> to vector<8x24xf32>
    %27 = arith.addf %24, %26 : vector<8x24xf32>
    %c0_23 = arith.constant 0 : index
    %c0_24 = arith.constant 0 : index
    %28 = vector.load %arg10[%c0_23, %c0_24] : memref<8x24xf32, #tpu.memory_space<vmem>>, vector<8x24xf32>
    tpu.vector_store %arg10[%c0_23, %c0_24], %27 {strides = array<i32>} : memref<8x24xf32, #tpu.memory_space<vmem>>, vector<8x24xf32>,
    return
  }
  func.func @transform_0(%arg0: i32) -> (i32, i32) {
    %c0_i32 = arith.constant 0 : i32
    %c0_i32_0 = arith.constant 0 : i32
    return %arg0, %c0_i32 : i32, i32
  }
  func.func @transform_1(%arg0: i32) -> (i32, i32) {
    %c0_i32 = arith.constant 0 : i32
    %c0_i32_0 = arith.constant 0 : i32
    %c0_i32_1 = arith.constant 0 : i32
    return %c0_i32, %c0_i32_0 : i32, i32
  }
  func.func @transform_2(%arg0: i32) -> (i32, i32) {
    %c0_i32 = arith.constant 0 : i32
    %c0_i32_0 = arith.constant 0 : i32
    %c0_i32_1 = arith.constant 0 : i32
    return %c0_i32, %c0_i32_0 : i32, i32
  }
  func.func @transform_3(%arg0: i32) -> (i32, i32) {
    %c0_i32 = arith.constant 0 : i32
    %c0_i32_0 = arith.constant 0 : i32
    %c0_i32_1 = arith.constant 0 : i32
    return %c0_i32, %c0_i32_0 : i32, i32
  }
  func.func @transform_4(%arg0: i32) -> (i32, i32) {
    %c0_i32 = arith.constant 0 : i32
    %c0_i32_0 = arith.constant 0 : i32
    %c0_i32_1 = arith.constant 0 : i32
    return %c0_i32, %c0_i32_0 : i32, i32
  }
  func.func @transform_5(%arg0: i32) -> (i32, i32) {
    %c0_i32 = arith.constant 0 : i32
    %c0_i32_0 = arith.constant 0 : i32
    %c0_i32_1 = arith.constant 0 : i32
    return %c0_i32, %c0_i32_0 : i32, i32
  }
  func.func @transform_6(%arg0: i32) -> (i32, i32) {
    %c0_i32 = arith.constant 0 : i32
    %c0_i32_0 = arith.constant 0 : i32
    %c0_i32_1 = arith.constant 0 : i32
    return %c0_i32, %c0_i32_0 : i32, i32
  }
  func.func @transform_7(%arg0: i32) -> (i32, i32) {
    %c0_i32 = arith.constant 0 : i32
    %c0_i32_0 = arith.constant 0 : i32
    %c0_i32_1 = arith.constant 0 : i32
    return %c0_i32, %c0_i32_0 : i32, i32
  }
  func.func @transform_8(%arg0: i32) -> (i32, i32) {
    %c0_i32 = arith.constant 0 : i32
    %c0_i32_0 = arith.constant 0 : i32
    %c0_i32_1 = arith.constant 0 : i32
    return %c0_i32, %c0_i32_0 : i32, i32
  }
  func.func @transform_9(%arg0: i32) -> (i32, i32) {
    %c0_i32 = arith.constant 0 : i32
    %c0_i32_0 = arith.constant 0 : i32
    return %arg0, %c0_i32 : i32, i32
  }
}

</mosaic_0001>

<llo_original>
// kernel: _lambda_.1
$region0: #{_lambda_.1}
  #allocation0 [shape = 'u32[]', space=smem, size = 0x4, offset = 0x4, fixed_abs, tag = 'smem constant byte address 0x4 - core index']
  #allocation1 [shape = 'u32[144,128]{1,0:T(1,128)}', space=vmem, size = 0x12000, scoped, tag = 'internal scratch']
  %s0 = inlined_call_operand.vmem [shape: f32[13,24], index: 0, kind: input, shape index: {}]
  %s1 = inlined_call_operand.vmem [shape: f32[24,128], index: 1, kind: input, shape index: {}]
  %s2 = inlined_call_operand.vmem [shape: f32[24,128], index: 2, kind: input, shape index: {}]
  %s3 = inlined_call_operand.vmem [shape: f32[24,128], index: 3, kind: input, shape index: {}]
  %s4 = inlined_call_operand.vmem [shape: f32[1,128], index: 4, kind: input, shape index: {}]
  %s5 = inlined_call_operand.vmem [shape: f32[128,256], index: 5, kind: input, shape index: {}]
  %s6 = inlined_call_operand.vmem [shape: f32[1,256], index: 6, kind: input, shape index: {}]
  %s7 = inlined_call_operand.vmem [shape: f32[256,24], index: 7, kind: input, shape index: {}]
  %s8 = inlined_call_operand.vmem [shape: f32[1,24], index: 8, kind: input, shape index: {}]
  %s9 = inlined_call_operand.vmem [shape: f32[13,24], index: 9, kind: output, shape index: {}]
  %s10 = sld [smem:[#allocation0]]
  $region69: #{_lambda_.1} parent=0
    _
  %s12 = ssub.s32 1, %s10
  %s13 = scalar_select 0, %s12, %s10
  loop: start=0, step=1, limit=4
  $region2: #{_lambda_.1} parent=0 // loop_pre_header
    _
  $region3: #{_lambda_.1} parent=0 // loop_header
    %s15 = sphi 0, %s19
    %p16 = scmp.ge.s32.totalorder %s15, 4
    %s25 = sphi 0, %s27
    %s28 = sphi 0, %s25
    %s29 = sphi 0, %s28
    %s45 = sphi 0, %s29
    %s49 = sphi 0, %s49
    %s51 = sphi 0, %s49
    %s52 = sphi 0, %s51
    %s66 = sphi 0, %s52
    %s70 = sphi 0, %s70
    %s72 = sphi 0, %s70
    %s73 = sphi 0, %s72
    %s87 = sphi 0, %s73
    %s91 = sphi 0, %s91
    %s93 = sphi 0, %s91
    %s94 = sphi 0, %s93
    %s108 = sphi 0, %s94
    %s112 = sphi 0, %s112
    %s114 = sphi 0, %s112
    %s115 = sphi 0, %s114
    %s129 = sphi 0, %s115
    %s133 = sphi 0, %s133
    %s135 = sphi 0, %s133
    %s136 = sphi 0, %s135
    %s150 = sphi 0, %s136
    %s154 = sphi 0, %s154
    %s156 = sphi 0, %s154
    %s157 = sphi 0, %s156
    %s171 = sphi 0, %s157
    %s175 = sphi 0, %s175
    %s177 = sphi 0, %s175
    %s178 = sphi 0, %s177
    %s192 = sphi 0, %s178
    %s196 = sphi 0, %s196
    %s198 = sphi 0, %s196
    %s199 = sphi 0, %s198
    %s213 = sphi 0, %s199
    %s219 = sphi 0, %s221
    %s222 = sphi 0, %s219
    %s223 = sphi 0, %s222
    %s239 = sphi 0, %s223
  $region4: #{_lambda_.1} parent=0 // loop_header_branch
    %18 = sbr.rel (%p16) target = $region8
  $region5: #{_lambda_.1} parent=0 // loop_body
    %s20 = ssub.s32 %s15, 1
    %s21 = ssub.s32 %s15, 2
    %s22 = sadd.s32 %s15, 1
    %s23 = ssub.s32 %s15, %s22
    %p24 = scmp.eq.s32.totalorder %s23, 0
    %s26 = sadd.s32 %s25, 1
    %s27 = scalar_select %p24, %s25, %s26
    %p30 = pneg %p24
    %p31 = scmp.eq.s32.totalorder %s15, 1
    %p32 = por %p30, %p31
    %p33 = scmp.ne.s32.totalorder %s25, %s28
    %p34 = scmp.eq.s32.totalorder %s15, 0
    %p35 = por %p33, %p34
    %p36 = scmp.ne.s32.totalorder %s25, %s28
    %p37 = scmp.eq.s32.totalorder %s20, 1
    %p38 = por %p36, %p37
    %p39 = scmp.ne.s32.totalorder %s28, %s29
    %p40 = scmp.eq.s32.totalorder %s20, 0
    %p41 = por %p39, %p40
    %p42 = scmp.ne.s32.totalorder %s28, %s29
    %p43 = scmp.eq.s32.totalorder %s21, 1
    %p44 = por %p42, %p43
    %p46 = scmp.ne.s32.totalorder %s29, %s45
    %p47 = scmp.eq.s32.totalorder %s21, 0
    %p48 = por %p46, %p47
    %s50 = sadd.s32 %s49, 1
    %p53 = scmp.eq.s32.totalorder %s15, 1
    %p54 = scmp.ne.s32.totalorder %s49, %s51
    %p55 = scmp.eq.s32.totalorder %s15, 0
    %p56 = por %p54, %p55
    %p57 = scmp.ne.s32.totalorder %s49, %s51
    %p58 = scmp.eq.s32.totalorder %s20, 1
    %p59 = por %p57, %p58
    %p60 = scmp.ne.s32.totalorder %s51, %s52
    %p61 = scmp.eq.s32.totalorder %s20, 0
    %p62 = por %p60, %p61
    %p63 = scmp.ne.s32.totalorder %s51, %s52
    %p64 = scmp.eq.s32.totalorder %s21, 1
    %p65 = por %p63, %p64
    %p67 = scmp.ne.s32.totalorder %s52, %s66
    %p68 = scmp.eq.s32.totalorder %s21, 0
    %p69 = por %p67, %p68
    %s71 = sadd.s32 %s70, 1
    %p74 = scmp.eq.s32.totalorder %s15, 1
    %p75 = scmp.ne.s32.totalorder %s70, %s72
    %p76 = scmp.eq.s32.totalorder %s15, 0
    %p77 = por %p75, %p76
    %p78 = scmp.ne.s32.totalorder %s70, %s72
    %p79 = scmp.eq.s32.totalorder %s20, 1
    %p80 = por %p78, %p79
    %p81 = scmp.ne.s32.totalorder %s72, %s73
    %p82 = scmp.eq.s32.totalorder %s20, 0
    %p83 = por %p81, %p82
    %p84 = scmp.ne.s32.totalorder %s72, %s73
    %p85 = scmp.eq.s32.totalorder %s21, 1
    %p86 = por %p84, %p85
    %p88 = scmp.ne.s32.totalorder %s73, %s87
    %p89 = scmp.eq.s32.totalorder %s21, 0
    %p90 = por %p88, %p89
    %s92 = sadd.s32 %s91, 1
    %p95 = scmp.eq.s32.totalorder %s15, 1
    %p96 = scmp.ne.s32.totalorder %s91, %s93
    %p97 = scmp.eq.s32.totalorder %s15, 0
    %p98 = por %p96, %p97
    %p99 = scmp.ne.s32.totalorder %s91, %s93
    %p100 = scmp.eq.s32.totalorder %s20, 1
    %p101 = por %p99, %p100
    %p102 = scmp.ne.s32.totalorder %s93, %s94
    %p103 = scmp.eq.s32.totalorder %s20, 0
    %p104 = por %p102, %p103
    %p105 = scmp.ne.s32.totalorder %s93, %s94
    %p106 = scmp.eq.s32.totalorder %s21, 1
    %p107 = por %p105, %p106
    %p109 = scmp.ne.s32.totalorder %s94, %s108
    %p110 = scmp.eq.s32.totalorder %s21, 0
    %p111 = por %p109, %p110
    %s113 = sadd.s32 %s112, 1
    %p116 = scmp.eq.s32.totalorder %s15, 1
    %p117 = scmp.ne.s32.totalorder %s112, %s114
    %p118 = scmp.eq.s32.totalorder %s15, 0
    %p119 = por %p117, %p118
    %p120 = scmp.ne.s32.totalorder %s112, %s114
    %p121 = scmp.eq.s32.totalorder %s20, 1
    %p122 = por %p120, %p121
    %p123 = scmp.ne.s32.totalorder %s114, %s115
    %p124 = scmp.eq.s32.totalorder %s20, 0
    %p125 = por %p123, %p124
    %p126 = scmp.ne.s32.totalorder %s114, %s115
    %p127 = scmp.eq.s32.totalorder %s21, 1
    %p128 = por %p126, %p127
    %p130 = scmp.ne.s32.totalorder %s115, %s129
    %p131 = scmp.eq.s32.totalorder %s21, 0
    %p132 = por %p130, %p131
    %s134 = sadd.s32 %s133, 1
    %p137 = scmp.eq.s32.totalorder %s15, 1
    %p138 = scmp.ne.s32.totalorder %s133, %s135
    %p139 = scmp.eq.s32.totalorder %s15, 0
    %p140 = por %p138, %p139
    %p141 = scmp.ne.s32.totalorder %s133, %s135
    %p142 = scmp.eq.s32.totalorder %s20, 1
    %p143 = por %p141, %p142
    %p144 = scmp.ne.s32.totalorder %s135, %s136
    %p145 = scmp.eq.s32.totalorder %s20, 0
    %p146 = por %p144, %p145
    %p147 = scmp.ne.s32.totalorder %s135, %s136
    %p148 = scmp.eq.s32.totalorder %s21, 1
    %p149 = por %p147, %p148
    %p151 = scmp.ne.s32.totalorder %s136, %s150
    %p152 = scmp.eq.s32.totalorder %s21, 0
    %p153 = por %p151, %p152
    %s155 = sadd.s32 %s154, 1
    %p158 = scmp.eq.s32.totalorder %s15, 1
    %p159 = scmp.ne.s32.totalorder %s154, %s156
    %p160 = scmp.eq.s32.totalorder %s15, 0
    %p161 = por %p159, %p160
    %p162 = scmp.ne.s32.totalorder %s154, %s156
    %p163 = scmp.eq.s32.totalorder %s20, 1
    %p164 = por %p162, %p163
    %p165 = scmp.ne.s32.totalorder %s156, %s157
    %p166 = scmp.eq.s32.totalorder %s20, 0
    %p167 = por %p165, %p166
    %p168 = scmp.ne.s32.totalorder %s156, %s157
    %p169 = scmp.eq.s32.totalorder %s21, 1
    %p170 = por %p168, %p169
    %p172 = scmp.ne.s32.totalorder %s157, %s171
    %p173 = scmp.eq.s32.totalorder %s21, 0
    %p174 = por %p172, %p173
    %s176 = sadd.s32 %s175, 1
    %p179 = scmp.eq.s32.totalorder %s15, 1
    %p180 = scmp.ne.s32.totalorder %s175, %s177
    %p181 = scmp.eq.s32.totalorder %s15, 0
    %p182 = por %p180, %p181
    %p183 = scmp.ne.s32.totalorder %s175, %s177
    %p184 = scmp.eq.s32.totalorder %s20, 1
    %p185 = por %p183, %p184
    %p186 = scmp.ne.s32.totalorder %s177, %s178
    %p187 = scmp.eq.s32.totalorder %s20, 0
    %p188 = por %p186, %p187
    %p189 = scmp.ne.s32.totalorder %s177, %s178
    %p190 = scmp.eq.s32.totalorder %s21, 1
    %p191 = por %p189, %p190
    %p193 = scmp.ne.s32.totalorder %s178, %s192
    %p194 = scmp.eq.s32.totalorder %s21, 0
    %p195 = por %p193, %p194
    %s197 = sadd.s32 %s196, 1
    %p200 = scmp.eq.s32.totalorder %s15, 1
    %p201 = scmp.ne.s32.totalorder %s196, %s198
    %p202 = scmp.eq.s32.totalorder %s15, 0
    %p203 = por %p201, %p202
    %p204 = scmp.ne.s32.totalorder %s196, %s198
    %p205 = scmp.eq.s32.totalorder %s20, 1
    %p206 = por %p204, %p205
    %p207 = scmp.ne.s32.totalorder %s198, %s199
    %p208 = scmp.eq.s32.totalorder %s20, 0
    %p209 = por %p207, %p208
    %p210 = scmp.ne.s32.totalorder %s198, %s199
    %p211 = scmp.eq.s32.totalorder %s21, 1
    %p212 = por %p210, %p211
    %p214 = scmp.ne.s32.totalorder %s199, %s213
    %p215 = scmp.eq.s32.totalorder %s21, 0
    %p216 = por %p214, %p215
    %s217 = ssub.s32 %s15, %s22
    %p218 = scmp.eq.s32.totalorder %s217, 0
    %s220 = sadd.s32 %s219, 1
    %s221 = scalar_select %p218, %s219, %s220
    %p224 = pneg %p218
    %p225 = scmp.eq.s32.totalorder %s15, 1
    %p226 = por %p224, %p225
    %p227 = scmp.ne.s32.totalorder %s219, %s222
    %p228 = scmp.eq.s32.totalorder %s15, 0
    %p229 = por %p227, %p228
    %p230 = scmp.ne.s32.totalorder %s219, %s222
    %p231 = scmp.eq.s32.totalorder %s20, 1
    %p232 = por %p230, %p231
    %p233 = scmp.ne.s32.totalorder %s222, %s223
    %p234 = scmp.eq.s32.totalorder %s20, 0
    %p235 = por %p233, %p234
    %p236 = scmp.ne.s32.totalorder %s222, %s223
    %p237 = scmp.eq.s32.totalorder %s21, 1
    %p238 = por %p236, %p237
    %p240 = scmp.ne.s32.totalorder %s223, %s239
    %p241 = scmp.eq.s32.totalorder %s21, 0
    %p242 = por %p240, %p241
    %p243 = scmp.le.s32.totalorder 1, %s15
    %p244 = scmp.lt.s32.totalorder %s15, 3
    %p245 = pnand %p243, %p244
    %p246 = pneg %p245
    // Predicated region
    $region9: #{_lambda_.1} parent=5 // pred_check
      _
    $region10: #{_lambda_.1} parent=5 // pred_check_branch
      %248 = sbr.rel (%p245) target = $region12
    $region11: #{_lambda_.1} parent=5 // pred_region
      %s249 = ssub.s32 %s15, 1
      // Predicated region
      $region13: #{_lambda_.1} parent=11 // pred_check
        %p250 = pneg %p62
      $region14: #{_lambda_.1} parent=11 // pred_check_branch
        %252 = sbr.rel (%p250) target = $region16
      $region15: #{_lambda_.1} parent=11 // pred_region
        _
      $region16: #{_lambda_.1} parent=11 // pred_fallthru
        _
      // Predicated region
      $region17: #{_lambda_.1} parent=11 // pred_check
        %p253 = pneg %p83
      $region18: #{_lambda_.1} parent=11 // pred_check_branch
        %255 = sbr.rel (%p253) target = $region20
      $region19: #{_lambda_.1} parent=11 // pred_region
        _
      $region20: #{_lambda_.1} parent=11 // pred_fallthru
        _
      // Predicated region
      $region21: #{_lambda_.1} parent=11 // pred_check
        %p256 = pneg %p104
      $region22: #{_lambda_.1} parent=11 // pred_check_branch
        %258 = sbr.rel (%p256) target = $region24
      $region23: #{_lambda_.1} parent=11 // pred_region
        _
      $region24: #{_lambda_.1} parent=11 // pred_fallthru
        _
      // Predicated region
      $region25: #{_lambda_.1} parent=11 // pred_check
        %p259 = pneg %p125
      $region26: #{_lambda_.1} parent=11 // pred_check_branch
        %261 = sbr.rel (%p259) target = $region28
      $region27: #{_lambda_.1} parent=11 // pred_region
        _
      $region28: #{_lambda_.1} parent=11 // pred_fallthru
        _
      // Predicated region
      $region29: #{_lambda_.1} parent=11 // pred_check
        %p262 = pneg %p146
      $region30: #{_lambda_.1} parent=11 // pred_check_branch
        %264 = sbr.rel (%p262) target = $region32
      $region31: #{_lambda_.1} parent=11 // pred_region
        _
      $region32: #{_lambda_.1} parent=11 // pred_fallthru
        _
      // Predicated region
      $region33: #{_lambda_.1} parent=11 // pred_check
        %p265 = pneg %p167
      $region34: #{_lambda_.1} parent=11 // pred_check_branch
        %267 = sbr.rel (%p265) target = $region36
      $region35: #{_lambda_.1} parent=11 // pred_region
        _
      $region36: #{_lambda_.1} parent=11 // pred_fallthru
        _
      // Predicated region
      $region37: #{_lambda_.1} parent=11 // pred_check
        %p268 = pneg %p188
      $region38: #{_lambda_.1} parent=11 // pred_check_branch
        %270 = sbr.rel (%p268) target = $region40
      $region39: #{_lambda_.1} parent=11 // pred_region
        _
      $region40: #{_lambda_.1} parent=11 // pred_fallthru
        _
      // Predicated region
      $region41: #{_lambda_.1} parent=11 // pred_check
        %p271 = pneg %p209
      $region42: #{_lambda_.1} parent=11 // pred_check_branch
        %273 = sbr.rel (%p271) target = $region44
      $region43: #{_lambda_.1} parent=11 // pred_region
        _
      $region44: #{_lambda_.1} parent=11 // pred_fallthru
        _
    $region12: #{_lambda_.1} parent=5 // pred_fallthru
      _
    %p274 = scmp.lt.s32.totalorder %s15, 2
    // Predicated region
    $region45: #{_lambda_.1} parent=5 // pred_check
      %p275 = pneg %p274
    $region46: #{_lambda_.1} parent=5 // pred_check_branch
      %277 = sbr.rel (%p275) target = $region48
    $region47: #{_lambda_.1} parent=5 // pred_region
      // Predicated region
      $region49: #{_lambda_.1} parent=47 // pred_check
        %p278 = pneg %p35
      $region50: #{_lambda_.1} parent=47 // pred_check_branch
        %280 = sbr.rel (%p278) target = $region52
      $region51: #{_lambda_.1} parent=47 // pred_region
        %p281 = scmp.lt.s32.totalorder %s15, 1
        %s282 = scalar_select %p281, %s15, 1
        %s283 = smul.addr %s282, 8
        %s284 = scalar_lea.vmem %s0, %s283
      $region52: #{_lambda_.1} parent=47 // pred_fallthru
        _
    $region48: #{_lambda_.1} parent=5 // pred_fallthru
      _
    %p285 = scmp.le.s32.totalorder 1, %s15
    %p286 = scmp.lt.s32.totalorder %s15, 3
    %p287 = pnand %p285, %p286
    %p288 = pneg %p287
    // Predicated region
    $region53: #{_lambda_.1} parent=5 // pred_check
      _
    $region54: #{_lambda_.1} parent=5 // pred_check_branch
      %290 = sbr.rel (%p287) target = $region56
    $region55: #{_lambda_.1} parent=5 // pred_region
      %s291 = ssub.s32 %s15, 1
      %p292 = scmp.lt.s32.totalorder %s20, 1
      %s293 = scalar_select %p292, %s20, 1
      %s294 = smul.addr %s293, 8
      %s295 = scalar_lea.vmem %s0, %s294
      %p296 = pneg %p41
      %p297 = pneg %p38
      %p298 = pneg %p62
      %p299 = pneg %p59
      %p300 = pneg %p83
      %p301 = pneg %p80
      %p302 = pneg %p104
      %p303 = pneg %p101
      %p304 = pneg %p125
      %p305 = pneg %p122
      %p306 = pneg %p146
      %p307 = pneg %p143
      %p308 = pneg %p167
      %p309 = pneg %p164
      %p310 = pneg %p188
      %p311 = pneg %p185
      %p312 = pneg %p209
      %p313 = pneg %p206
      %p314 = pneg %p235
      %p315 = pneg %p232
      %p316 = scmp.lt.s32.totalorder %s20, 1
      %s317 = scalar_select %p316, %s20, 1
      %s318 = smul.addr %s317, 8
      %s319 = scalar_lea.vmem %s9, %s318
      %p320 = scmp.lt.s32.totalorder %s20, 1
      %s321 = scalar_select %p320, %s20, 1
      %s322 = smul.addr %s321, 8
      %s323 = scalar_lea.vmem %s0, %s322
      %p324 = scmp.lt.s32.totalorder %s20, 1
      %s325 = scalar_select %p324, %s20, 1
      %s326 = smul.addr %s325, 8
      %s327 = scalar_lea.vmem %s9, %s326
      %v328 = vld [vmem:[%s323] sm:$0xff]
      %v329 = vmul.f32 %v328, %v328
      %v330 = vmul.f32 %v329, %v328
      %v331 = vld [vmem:[%s1] sm:$0xff]
      %v332 = vld [vmem:[%s1 + $0x8] sm:$0xff]
      %v333 = vld [vmem:[%s1 + $0x10] sm:$0xff]
      %v334 = vld [vmem:[%s2] sm:$0xff]
      %v335 = vld [vmem:[%s2 + $0x8] sm:$0xff]
      %v336 = vld [vmem:[%s2 + $0x10] sm:$0xff]
      %vm337 = vcmask 195584
      %v339 = vsel %vm337, %v329, 0
      %341 = vmatprep.subr.mxu0 0.0
      %342 = vmatpush1.msra.mxu0 %v334
      %343 = vmatprep.subr.mxu0 0.0
      %344 = vmatpush1.msra.mxu0 %v335
      %345 = vmatprep.subr.mxu0 0.0
      %346 = vmatpush1.msra.mxu0 %v336
      %347 = vmatprep.subr.mxu0 0.0
      %348 = vmatpush1.msra.mxu0 0.0
      %349 = vmatprep.subr.mxu0 0.0
      %350 = vmatpush1.msra.mxu0 0.0
      %351 = vmatprep.subr.mxu0 0.0
      %352 = vmatpush1.msra.mxu0 0.0
      %353 = vmatprep.subr.mxu0 0.0
      %354 = vmatpush1.msra.mxu0 0.0
      %355 = vmatprep.subr.mxu0 0.0
      %356 = vmatpush1.msra.mxu0 0.0
      %357 = vmatprep.subr.mxu0 0.0
      %358 = vmatpush1.msra.mxu0 0.0
      %359 = vmatprep.subr.mxu0 0.0
      %360 = vmatpush1.msra.mxu0 0.0
      %361 = vmatprep.subr.mxu0 0.0
      %362 = vmatpush1.msra.mxu0 0.0
      %363 = vmatprep.subr.mxu0 0.0
      %364 = vmatpush1.msra.mxu0 0.0
      %365 = vmatprep.subr.mxu0 0.0
      %366 = vmatpush1.msra.mxu0 0.0
      %367 = vmatprep.subr.mxu0 0.0
      %368 = vmatpush1.msra.mxu0 0.0
      %369 = vmatprep.subr.mxu0 0.0
      %370 = vmatpush1.msra.mxu0 0.0
      %371 = vmatprep.subr.mxu0 0.0
      %372 = vmatpush1.msra.mxu0 0.0
      %373 = vmatprep.subr.mxu0 0.0
      %374 = vmatpush1.msra.mxu0 0.0
      %375 = vmatprep.subr.mxu0 0.0
      %376 = vmatpush1.msra.mxu0 0.0
      %377 = vmatprep.subr.mxu0 0.0
      %378 = vmatpush1.msra.mxu0 0.0
      %379 = vmatprep.subr.mxu0 0.0
      %380 = vmatpush1.msra.mxu0 0.0
      %381 = vmatprep.subr.mxu0 0.0
      %382 = vmatpush1.msra.mxu0 0.0
      %383 = vmatprep.subr.mxu0 0.0
      %384 = vmatpush1.msra.mxu0 0.0
      %385 = vmatprep.subr.mxu0 0.0
      %386 = vmatpush1.msra.mxu0 0.0
      %387 = vmatprep.subr.mxu0 0.0
      %388 = vmatpush1.msra.mxu0 0.0
      %389 = vmatprep.subr.mxu0 0.0
      %390 = vmatpush1.msra.mxu0 0.0
      %391 = vmatprep.subr.mxu0 0.0
      %392 = vmatpush1.msra.mxu0 0.0
      %393 = vmatprep.subr.mxu0 0.0
      %394 = vmatpush1.msra.mxu0 0.0
      %395 = vmatprep.subr.mxu0 0.0
      %396 = vmatpush1.msra.mxu0 0.0
      %397 = vmatprep.subr.mxu0 0.0
      %398 = vmatpush1.msra.mxu0 0.0
      %399 = vmatprep.subr.mxu0 0.0
      %400 = vmatpush1.msra.mxu0 0.0
      %401 = vmatprep.subr.mxu0 0.0
      %402 = vmatpush1.msra.mxu0 0.0
      %403 = vmatprep.subr.mxu0 0.0
      %404 = vmatpush1.msra.mxu0 0.0
      %405 = vmatprep.mubr.f32.mxu0 0.0
      %406 = vmatmul.mubr.f32.gmra.mrb[0].mxu0 %v339
      %v407 = vpop.f32.mrb[0].mxu0
      %v408 = vadd.f32 0.0, %v407
      %v409 = vpop.f32.mrb[0].mxu0
      %410 = vdwg.mxu0
      %v412 = vsel %vm337, %v328, 0
      %414 = vmatprep.subr.mxu0 0.0
      %415 = vmatpush1.msra.mxu0 %v331
      %416 = vmatprep.subr.mxu0 0.0
      %417 = vmatpush1.msra.mxu0 %v332
      %418 = vmatprep.subr.mxu0 0.0
      %419 = vmatpush1.msra.mxu0 %v333
      %420 = vmatprep.subr.mxu0 0.0
      %421 = vmatpush1.msra.mxu0 0.0
      %422 = vmatprep.subr.mxu0 0.0
      %423 = vmatpush1.msra.mxu0 0.0
      %424 = vmatprep.subr.mxu0 0.0
      %425 = vmatpush1.msra.mxu0 0.0
      %426 = vmatprep.subr.mxu0 0.0
      %427 = vmatpush1.msra.mxu0 0.0
      %428 = vmatprep.subr.mxu0 0.0
      %429 = vmatpush1.msra.mxu0 0.0
      %430 = vmatprep.subr.mxu0 0.0
      %431 = vmatpush1.msra.mxu0 0.0
      %432 = vmatprep.subr.mxu0 0.0
      %433 = vmatpush1.msra.mxu0 0.0
      %434 = vmatprep.subr.mxu0 0.0
      %435 = vmatpush1.msra.mxu0 0.0
      %436 = vmatprep.subr.mxu0 0.0
      %437 = vmatpush1.msra.mxu0 0.0
      %438 = vmatprep.subr.mxu0 0.0
      %439 = vmatpush1.msra.mxu0 0.0
      %440 = vmatprep.subr.mxu0 0.0
      %441 = vmatpush1.msra.mxu0 0.0
      %442 = vmatprep.subr.mxu0 0.0
      %443 = vmatpush1.msra.mxu0 0.0
      %444 = vmatprep.subr.mxu0 0.0
      %445 = vmatpush1.msra.mxu0 0.0
      %446 = vmatprep.subr.mxu0 0.0
      %447 = vmatpush1.msra.mxu0 0.0
      %448 = vmatprep.subr.mxu0 0.0
      %449 = vmatpush1.msra.mxu0 0.0
      %450 = vmatprep.subr.mxu0 0.0
      %451 = vmatpush1.msra.mxu0 0.0
      %452 = vmatprep.subr.mxu0 0.0
      %453 = vmatpush1.msra.mxu0 0.0
      %454 = vmatprep.subr.mxu0 0.0
      %455 = vmatpush1.msra.mxu0 0.0
      %456 = vmatprep.subr.mxu0 0.0
      %457 = vmatpush1.msra.mxu0 0.0
      %458 = vmatprep.subr.mxu0 0.0
      %459 = vmatpush1.msra.mxu0 0.0
      %460 = vmatprep.subr.mxu0 0.0
      %461 = vmatpush1.msra.mxu0 0.0
      %462 = vmatprep.subr.mxu0 0.0
      %463 = vmatpush1.msra.mxu0 0.0
      %464 = vmatprep.subr.mxu0 0.0
      %465 = vmatpush1.msra.mxu0 0.0
      %466 = vmatprep.subr.mxu0 0.0
      %467 = vmatpush1.msra.mxu0 0.0
      %468 = vmatprep.subr.mxu0 0.0
      %469 = vmatpush1.msra.mxu0 0.0
      %470 = vmatprep.subr.mxu0 0.0
      %471 = vmatpush1.msra.mxu0 0.0
      %472 = vmatprep.subr.mxu0 0.0
      %473 = vmatpush1.msra.mxu0 0.0
      %474 = vmatprep.subr.mxu0 0.0
      %475 = vmatpush1.msra.mxu0 0.0
      %476 = vmatprep.subr.mxu0 0.0
      %477 = vmatpush1.msra.mxu0 0.0
      %478 = vmatprep.mubr.f32.mxu0 0.0
      %479 = vmatmul.mubr.f32.gmra.mrb[0].mxu0 %v412
      %v480 = vpop.f32.mrb[0].mxu0
      %v481 = vadd.f32 %v408, %v480
      %v482 = vpop.f32.mrb[0].mxu0
      %483 = vdwg.mxu0
      %v484 = vld [vmem:[%s3] sm:$0xff]
      %v485 = vld [vmem:[%s3 + $0x8] sm:$0xff]
      %v486 = vld [vmem:[%s3 + $0x10] sm:$0xff]
      %v488 = vsel %vm337, %v330, 0
      %490 = vmatprep.subr.mxu0 0.0
      %491 = vmatpush1.msra.mxu0 %v484
      %492 = vmatprep.subr.mxu0 0.0
      %493 = vmatpush1.msra.mxu0 %v485
      %494 = vmatprep.subr.mxu0 0.0
      %495 = vmatpush1.msra.mxu0 %v486
      %496 = vmatprep.subr.mxu0 0.0
      %497 = vmatpush1.msra.mxu0 0.0
      %498 = vmatprep.subr.mxu0 0.0
      %499 = vmatpush1.msra.mxu0 0.0
      %500 = vmatprep.subr.mxu0 0.0
      %501 = vmatpush1.msra.mxu0 0.0
      %502 = vmatprep.subr.mxu0 0.0
      %503 = vmatpush1.msra.mxu0 0.0
      %504 = vmatprep.subr.mxu0 0.0
      %505 = vmatpush1.msra.mxu0 0.0
      %506 = vmatprep.subr.mxu0 0.0
      %507 = vmatpush1.msra.mxu0 0.0
      %508 = vmatprep.subr.mxu0 0.0
      %509 = vmatpush1.msra.mxu0 0.0
      %510 = vmatprep.subr.mxu0 0.0
      %511 = vmatpush1.msra.mxu0 0.0
      %512 = vmatprep.subr.mxu0 0.0
      %513 = vmatpush1.msra.mxu0 0.0
      %514 = vmatprep.subr.mxu0 0.0
      %515 = vmatpush1.msra.mxu0 0.0
      %516 = vmatprep.subr.mxu0 0.0
      %517 = vmatpush1.msra.mxu0 0.0
      %518 = vmatprep.subr.mxu0 0.0
      %519 = vmatpush1.msra.mxu0 0.0
      %520 = vmatprep.subr.mxu0 0.0
      %521 = vmatpush1.msra.mxu0 0.0
      %522 = vmatprep.subr.mxu0 0.0
      %523 = vmatpush1.msra.mxu0 0.0
      %524 = vmatprep.subr.mxu0 0.0
      %525 = vmatpush1.msra.mxu0 0.0
      %526 = vmatprep.subr.mxu0 0.0
      %527 = vmatpush1.msra.mxu0 0.0
      %528 = vmatprep.subr.mxu0 0.0
      %529 = vmatpush1.msra.mxu0 0.0
      %530 = vmatprep.subr.mxu0 0.0
      %531 = vmatpush1.msra.mxu0 0.0
      %532 = vmatprep.subr.mxu0 0.0
      %533 = vmatpush1.msra.mxu0 0.0
      %534 = vmatprep.subr.mxu0 0.0
      %535 = vmatpush1.msra.mxu0 0.0
      %536 = vmatprep.subr.mxu0 0.0
      %537 = vmatpush1.msra.mxu0 0.0
      %538 = vmatprep.subr.mxu0 0.0
      %539 = vmatpush1.msra.mxu0 0.0
      %540 = vmatprep.subr.mxu0 0.0
      %541 = vmatpush1.msra.mxu0 0.0
      %542 = vmatprep.subr.mxu0 0.0
      %543 = vmatpush1.msra.mxu0 0.0
      %544 = vmatprep.subr.mxu0 0.0
      %545 = vmatpush1.msra.mxu0 0.0
      %546 = vmatprep.subr.mxu0 0.0
      %547 = vmatpush1.msra.mxu0 0.0
      %548 = vmatprep.subr.mxu0 0.0
      %549 = vmatpush1.msra.mxu0 0.0
      %550 = vmatprep.subr.mxu0 0.0
      %551 = vmatpush1.msra.mxu0 0.0
      %552 = vmatprep.subr.mxu0 0.0
      %553 = vmatpush1.msra.mxu0 0.0
      %554 = vmatprep.mubr.f32.mxu0 0.0
      %555 = vmatmul.mubr.f32.gmra.mrb[0].mxu0 %v488
      %v556 = vpop.f32.mrb[0].mxu0
      %v557 = vadd.f32 0.0, %v556
      %v558 = vpop.f32.mrb[0].mxu0
      %559 = vdwg.mxu0
      %v560 = vadd.f32 %v481, %v557
      %v561 = vld [vmem:[%s4] sm:$0x1]
      %v563 = vlaneseq
      %v564 = vshrl.u32 %v563, 7
      %v565 = vsub.s32 0, %v564
      %v566 = vrot.slane %v561, %v565
      %v568 = vadd.f32 %v560, %v566
      %v569 = vmax.f32 %v568, 0.0
      %v570 = vld [vmem:[%s5] sm:$0xff]
      %v571 = vld [vmem:[%s5 + $0x8] sm:$0xff]
      %v572 = vld [vmem:[%s5 + $0x10] sm:$0xff]
      %v573 = vld [vmem:[%s5 + $0x18] sm:$0xff]
      %v574 = vld [vmem:[%s5 + $0x20] sm:$0xff]
      %v575 = vld [vmem:[%s5 + $0x28] sm:$0xff]
      %v576 = vld [vmem:[%s5 + $0x30] sm:$0xff]
      %v577 = vld [vmem:[%s5 + $0x38] sm:$0xff]
      %v578 = vld [vmem:[%s5 + $0x40] sm:$0xff]
      %v579 = vld [vmem:[%s5 + $0x48] sm:$0xff]
      %v580 = vld [vmem:[%s5 + $0x50] sm:$0xff]
      %v581 = vld [vmem:[%s5 + $0x58] sm:$0xff]
      %v582 = vld [vmem:[%s5 + $0x60] sm:$0xff]
      %v583 = vld [vmem:[%s5 + $0x68] sm:$0xff]
      %v584 = vld [vmem:[%s5 + $0x70] sm:$0xff]
      %v585 = vld [vmem:[%s5 + $0x78] sm:$0xff]
      %v586 = vld [vmem:[%s5 + $0x80] sm:$0xff]
      %v587 = vld [vmem:[%s5 + $0x88] sm:$0xff]
      %v588 = vld [vmem:[%s5 + $0x90] sm:$0xff]
      %v589 = vld [vmem:[%s5 + $0x98] sm:$0xff]
      %v590 = vld [vmem:[%s5 + $0xa0] sm:$0xff]
      %v591 = vld [vmem:[%s5 + $0xa8] sm:$0xff]
      %v592 = vld [vmem:[%s5 + $0xb0] sm:$0xff]
      %v593 = vld [vmem:[%s5 + $0xb8] sm:$0xff]
      %v594 = vld [vmem:[%s5 + $0xc0] sm:$0xff]
      %v595 = vld [vmem:[%s5 + $0xc8] sm:$0xff]
      %v596 = vld [vmem:[%s5 + $0xd0] sm:$0xff]
      %v597 = vld [vmem:[%s5 + $0xd8] sm:$0xff]
      %v598 = vld [vmem:[%s5 + $0xe0] sm:$0xff]
      %v599 = vld [vmem:[%s5 + $0xe8] sm:$0xff]
      %v600 = vld [vmem:[%s5 + $0xf0] sm:$0xff]
      %v601 = vld [vmem:[%s5 + $0xf8] sm:$0xff]
      %v602 = vld [vmem:[%s6] sm:$0x3]
      %v604 = vlaneseq
      %v605 = vshrl.u32 %v604, 7
      %v606 = vsub.s32 0, %v605
      %v607 = vrot.slane %v602, %v606
      %v608 = vlaneseq
      %v609 = vshrl.u32 %v608, 7
      %v610 = vsub.s32 1, %v609
      %v611 = vrot.slane %v602, %v610
      %614 = vmatprep.subr.mxu0 %v571
      %615 = vmatpush1.msra.mxu0 %v570
      %616 = vmatprep.subr.mxu0 %v573
      %617 = vmatpush1.msra.mxu0 %v572
      %618 = vmatprep.subr.mxu0 %v575
      %619 = vmatpush1.msra.mxu0 %v574
      %620 = vmatprep.subr.mxu0 %v577
      %621 = vmatpush1.msra.mxu0 %v576
      %622 = vmatprep.subr.mxu0 %v579
      %623 = vmatpush1.msra.mxu0 %v578
      %624 = vmatprep.subr.mxu0 %v581
      %625 = vmatpush1.msra.mxu0 %v580
      %626 = vmatprep.subr.mxu0 %v583
      %627 = vmatpush1.msra.mxu0 %v582
      %628 = vmatprep.subr.mxu0 %v585
      %629 = vmatpush1.msra.mxu0 %v584
      %630 = vmatprep.subr.mxu0 %v587
      %631 = vmatpush1.msra.mxu0 %v586
      %632 = vmatprep.subr.mxu0 %v589
      %633 = vmatpush1.msra.mxu0 %v588
      %634 = vmatprep.subr.mxu0 %v591
      %635 = vmatpush1.msra.mxu0 %v590
      %636 = vmatprep.subr.mxu0 %v593
      %637 = vmatpush1.msra.mxu0 %v592
      %638 = vmatprep.subr.mxu0 %v595
      %639 = vmatpush1.msra.mxu0 %v594
      %640 = vmatprep.subr.mxu0 %v597
      %641 = vmatpush1.msra.mxu0 %v596
      %642 = vmatprep.subr.mxu0 %v599
      %643 = vmatpush1.msra.mxu0 %v598
      %644 = vmatprep.subr.mxu0 %v601
      %645 = vmatpush1.msra.mxu0 %v600
      %646 = vmatprep.subr.mxu0 0.0
      %647 = vmatpush1.msra.mxu0 0.0
      %648 = vmatprep.subr.mxu0 0.0
      %649 = vmatpush1.msra.mxu0 0.0
      %650 = vmatprep.subr.mxu0 0.0
      %651 = vmatpush1.msra.mxu0 0.0
      %652 = vmatprep.subr.mxu0 0.0
      %653 = vmatpush1.msra.mxu0 0.0
      %654 = vmatprep.subr.mxu0 0.0
      %655 = vmatpush1.msra.mxu0 0.0
      %656 = vmatprep.subr.mxu0 0.0
      %657 = vmatpush1.msra.mxu0 0.0
      %658 = vmatprep.subr.mxu0 0.0
      %659 = vmatpush1.msra.mxu0 0.0
      %660 = vmatprep.subr.mxu0 0.0
      %661 = vmatpush1.msra.mxu0 0.0
      %662 = vmatprep.subr.mxu0 0.0
      %663 = vmatpush1.msra.mxu0 0.0
      %664 = vmatprep.subr.mxu0 0.0
      %665 = vmatpush1.msra.mxu0 0.0
      %666 = vmatprep.subr.mxu0 0.0
      %667 = vmatpush1.msra.mxu0 0.0
      %668 = vmatprep.subr.mxu0 0.0
      %669 = vmatpush1.msra.mxu0 0.0
      %670 = vmatprep.subr.mxu0 0.0
      %671 = vmatpush1.msra.mxu0 0.0
      %672 = vmatprep.subr.mxu0 0.0
      %673 = vmatpush1.msra.mxu0 0.0
      %674 = vmatprep.subr.mxu0 0.0
      %675 = vmatpush1.msra.mxu0 0.0
      %676 = vmatprep.subr.mxu0 0.0
      %677 = vmatpush1.msra.mxu0 0.0
      %678 = vmatprep.mubr.f32.mxu0 0.0
      %679 = vmatmul.mubr.f32.gmra.mrb[0].mxu0 %v569
      %v680 = vpop.f32.mrb[0].mxu0
      %v681 = vadd.f32 %v607, %v680
      %v682 = vpop.f32.mrb[0].mxu0
      %v683 = vadd.f32 %v611, %v682
      %684 = vdwg.mxu0
      %v685 = vmax.f32 %v681, 0.0
      %v686 = vmax.f32 %v683, 0.0
      %v687 = vld [vmem:[%s7] sm:$0xff]
      %v688 = vld [vmem:[%s7 + $0x8] sm:$0xff]
      %v689 = vld [vmem:[%s7 + $0x10] sm:$0xff]
      %v690 = vld [vmem:[%s7 + $0x18] sm:$0xff]
      %v691 = vld [vmem:[%s7 + $0x20] sm:$0xff]
      %v692 = vld [vmem:[%s7 + $0x28] sm:$0xff]
      %v693 = vld [vmem:[%s7 + $0x30] sm:$0xff]
      %v694 = vld [vmem:[%s7 + $0x38] sm:$0xff]
      %v695 = vld [vmem:[%s7 + $0x40] sm:$0xff]
      %v696 = vld [vmem:[%s7 + $0x48] sm:$0xff]
      %v697 = vld [vmem:[%s7 + $0x50] sm:$0xff]
      %v698 = vld [vmem:[%s7 + $0x58] sm:$0xff]
      %v699 = vld [vmem:[%s7 + $0x60] sm:$0xff]
      %v700 = vld [vmem:[%s7 + $0x68] sm:$0xff]
      %v701 = vld [vmem:[%s7 + $0x70] sm:$0xff]
      %v702 = vld [vmem:[%s7 + $0x78] sm:$0xff]
      %v703 = vld [vmem:[%s7 + $0x80] sm:$0xff]
      %v704 = vld [vmem:[%s7 + $0x88] sm:$0xff]
      %v705 = vld [vmem:[%s7 + $0x90] sm:$0xff]
      %v706 = vld [vmem:[%s7 + $0x98] sm:$0xff]
      %v707 = vld [vmem:[%s7 + $0xa0] sm:$0xff]
      %v708 = vld [vmem:[%s7 + $0xa8] sm:$0xff]
      %v709 = vld [vmem:[%s7 + $0xb0] sm:$0xff]
      %v710 = vld [vmem:[%s7 + $0xb8] sm:$0xff]
      %v711 = vld [vmem:[%s7 + $0xc0] sm:$0xff]
      %v712 = vld [vmem:[%s7 + $0xc8] sm:$0xff]
      %v713 = vld [vmem:[%s7 + $0xd0] sm:$0xff]
      %v714 = vld [vmem:[%s7 + $0xd8] sm:$0xff]
      %v715 = vld [vmem:[%s7 + $0xe0] sm:$0xff]
      %v716 = vld [vmem:[%s7 + $0xe8] sm:$0xff]
      %v717 = vld [vmem:[%s7 + $0xf0] sm:$0xff]
      %v718 = vld [vmem:[%s7 + $0xf8] sm:$0xff]
      %v719 = vld [vmem:[%s8] sm:$0x1]
      %v721 = vlaneseq
      %v722 = vshrl.u32 %v721, 7
      %v723 = vsub.s32 0, %v722
      %v724 = vrot.slane %v719, %v723
      %726 = vmatprep.subr.mxu0 0.0
      %727 = vmatpush1.msra.mxu0 %v687
      %728 = vmatprep.subr.mxu0 0.0
      %729 = vmatpush1.msra.mxu0 %v688
      %730 = vmatprep.subr.mxu0 0.0
      %731 = vmatpush1.msra.mxu0 %v689
      %732 = vmatprep.subr.mxu0 0.0
      %733 = vmatpush1.msra.mxu0 %v690
      %734 = vmatprep.subr.mxu0 0.0
      %735 = vmatpush1.msra.mxu0 %v691
      %736 = vmatprep.subr.mxu0 0.0
      %737 = vmatpush1.msra.mxu0 %v692
      %738 = vmatprep.subr.mxu0 0.0
      %739 = vmatpush1.msra.mxu0 %v693
      %740 = vmatprep.subr.mxu0 0.0
      %741 = vmatpush1.msra.mxu0 %v694
      %742 = vmatprep.subr.mxu0 0.0
      %743 = vmatpush1.msra.mxu0 %v695
      %744 = vmatprep.subr.mxu0 0.0
      %745 = vmatpush1.msra.mxu0 %v696
      %746 = vmatprep.subr.mxu0 0.0
      %747 = vmatpush1.msra.mxu0 %v697
      %748 = vmatprep.subr.mxu0 0.0
      %749 = vmatpush1.msra.mxu0 %v698
      %750 = vmatprep.subr.mxu0 0.0
      %751 = vmatpush1.msra.mxu0 %v699
      %752 = vmatprep.subr.mxu0 0.0
      %753 = vmatpush1.msra.mxu0 %v700
      %754 = vmatprep.subr.mxu0 0.0
      %755 = vmatpush1.msra.mxu0 %v701
      %756 = vmatprep.subr.mxu0 0.0
      %757 = vmatpush1.msra.mxu0 %v702
      %758 = vmatprep.subr.mxu0 0.0
      %759 = vmatpush1.msra.mxu0 %v703
      %760 = vmatprep.subr.mxu0 0.0
      %761 = vmatpush1.msra.mxu0 %v704
      %762 = vmatprep.subr.mxu0 0.0
      %763 = vmatpush1.msra.mxu0 %v705
      %764 = vmatprep.subr.mxu0 0.0
      %765 = vmatpush1.msra.mxu0 %v706
      %766 = vmatprep.subr.mxu0 0.0
      %767 = vmatpush1.msra.mxu0 %v707
      %768 = vmatprep.subr.mxu0 0.0
      %769 = vmatpush1.msra.mxu0 %v708
      %770 = vmatprep.subr.mxu0 0.0
      %771 = vmatpush1.msra.mxu0 %v709
      %772 = vmatprep.subr.mxu0 0.0
      %773 = vmatpush1.msra.mxu0 %v710
      %774 = vmatprep.subr.mxu0 0.0
      %775 = vmatpush1.msra.mxu0 %v711
      %776 = vmatprep.subr.mxu0 0.0
      %777 = vmatpush1.msra.mxu0 %v712
      %778 = vmatprep.subr.mxu0 0.0
      %779 = vmatpush1.msra.mxu0 %v713
      %780 = vmatprep.subr.mxu0 0.0
      %781 = vmatpush1.msra.mxu0 %v714
      %782 = vmatprep.subr.mxu0 0.0
      %783 = vmatpush1.msra.mxu0 %v715
      %784 = vmatprep.subr.mxu0 0.0
      %785 = vmatpush1.msra.mxu0 %v716
      %786 = vmatprep.subr.mxu0 0.0
      %787 = vmatpush1.msra.mxu0 %v717
      %788 = vmatprep.subr.mxu0 0.0
      %789 = vmatpush1.msra.mxu0 %v718
      %790 = vmatprep.mubr.f32.mxu0 %v686
      %791 = vmatmul.mubr.f32.gmra.mrb[0].mxu0 %v685
      %v792 = vpop.f32.mrb[0].mxu0
      %v793 = vadd.f32 %v724, %v792
      %v794 = vpop.f32.mrb[0].mxu0
      %795 = vdwg.mxu0
      %796 = vst.msk [vmem:[%s327] sm:$0xff] %vm337, %v793
      %p797 = scmp.lt.s32.totalorder %s20, 1
      %s798 = scalar_select %p797, %s20, 1
      %s799 = smul.addr %s798, 8
      %s800 = scalar_lea.vmem %s9, %s799
      // Predicated region
      $region57: #{_lambda_.1} parent=55 // pred_check
        %p801 = pneg %p232
      $region58: #{_lambda_.1} parent=55 // pred_check_branch
        %803 = sbr.rel (%p801) target = $region60
      $region59: #{_lambda_.1} parent=55 // pred_region
        _
      $region60: #{_lambda_.1} parent=55 // pred_fallthru
        _
    $region56: #{_lambda_.1} parent=5 // pred_fallthru
      _
    %p804 = scmp.le.s32.totalorder 2, %s15
    // Predicated region
    $region61: #{_lambda_.1} parent=5 // pred_check
      %p805 = pneg %p804
    $region62: #{_lambda_.1} parent=5 // pred_check_branch
      %807 = sbr.rel (%p805) target = $region64
    $region63: #{_lambda_.1} parent=5 // pred_region
      %s808 = ssub.s32 %s15, 2
      // Predicated region
      $region65: #{_lambda_.1} parent=63 // pred_check
        %p809 = pneg %p238
      $region66: #{_lambda_.1} parent=63 // pred_check_branch
        %811 = sbr.rel (%p809) target = $region68
      $region67: #{_lambda_.1} parent=63 // pred_region
        %p812 = scmp.lt.s32.totalorder %s21, 1
        %s813 = scalar_select %p812, %s21, 1
        %s814 = smul.addr %s813, 8
        %s815 = scalar_lea.vmem %s9, %s814
      $region68: #{_lambda_.1} parent=63 // pred_fallthru
        _
    $region64: #{_lambda_.1} parent=5 // pred_fallthru
      _
  $region6: #{_lambda_.1} parent=0 // loop_footer
    %s19 = sadd.s32 1, %s15
  $region7: #{_lambda_.1} parent=0 // loop_footer_branch
    %14 = sbr.rel target = $region3
  $region8: #{_lambda_.1} parent=0 // loop_exit
    _

</llo_original>
